<compile_context>
chip_gen: v7x
topology: tpu7x:2x2x1
jax: 0.10.0
libtpu: 0.0.40
codegen_flags: <defaults>
</compile_context>

<pallas_src>
import functools

import jax
import jax.numpy as jnp
from jax import lax
from jax.experimental import pallas as pl
from jax.experimental.pallas import tpu as pltpu

_LANE = 128
_SUBLANE = 8
_MAX_TILE_ROWS = 2048
_EPS = 1e-8


def _disc_loss_kernel(real_ref, fake_ref, out_ref, *,
                      rows, tile_rows, tiles_per_core, needs_row_mask):
    c = pl.program_id(0)          # core-split index ("parallel")
    t = pl.program_id(1)          # tile index within this core ("arbitrary")

    @pl.when(t == 0)
    def _():
        out_ref[...] = jnp.zeros_like(out_ref)

    r = real_ref[...].astype(jnp.float32)
    f = fake_ref[...].astype(jnp.float32)

    # Fused:  -log(r+eps) - log(1-f+eps)  ==  -log((r+eps) * (1-f+eps))
    term = -jnp.log((r + _EPS) * (1.0 - f + _EPS))

    if needs_row_mask:
        # Only emitted when the tile coverage overshoots the real row count
        # (partial last tile).  Ghost rows hold stale VMEM -> zero them out.
        tile_idx = c * tiles_per_core + t
        row_ids = (lax.broadcasted_iota(jnp.int32, (tile_rows, _LANE), 0)
                   + tile_idx * tile_rows)
        term = jnp.where(row_ids < rows, term, 0.0)

    # Sublane fold: (tile_rows, 128) -> (tile_rows//8, 8, 128) -> sum -> (8, 128).
    # Pure VPU adds into the resident lane-dense output block.
    out_ref[...] += term.reshape(tile_rows // _SUBLANE, _SUBLANE, _LANE).sum(axis=0)


def discriminator_loss(d_outputs_real, d_outputs_fake, *,
                       max_tile_rows=_MAX_TILE_ROWS):
    """Pallas implementation of DiscriminatorLoss.forward.

    Accepts arbitrary (matching) shapes; returns a float32 scalar.
    """
    assert d_outputs_real.shape == d_outputs_fake.shape
    total_elems = d_outputs_real.size
    assert total_elems > 0

    # Flatten in the ORIGINAL dtype (no wrapper cast, no full-array copy).
    flat_r = d_outputs_real.reshape(-1)
    flat_f = d_outputs_fake.reshape(-1)

    # Minimal (<128 element) lane-alignment pad with NEUTRAL values:
    #   real=1 -> -log(1+eps) == 0 in f32,  fake=0 -> -log(1-0+eps) == 0.
    lane_pad = (-total_elems) % _LANE
    if lane_pad:
        flat_r = jnp.pad(flat_r, (0, lane_pad), constant_values=1.0)
        flat_f = jnp.pad(flat_f, (0, lane_pad), constant_values=0.0)
    rows = (total_elems + lane_pad) // _LANE

    r2d = flat_r.reshape(rows, _LANE)
    f2d = flat_f.reshape(rows, _LANE)

    # Tile selection: one block for small inputs (no pipeline overhead),
    # otherwise 2048-row tiles (1 MiB/input/buffer).  Partial last tiles are
    # handled by the in-kernel row mask, never by shrinking tiles.
    if rows <= max_tile_rows:
        tile_rows = ((rows + _SUBLANE - 1) // _SUBLANE) * _SUBLANE
    else:
        tile_rows = max_tile_rows
    num_tiles = -(-rows // tile_rows)

    # Split tiles across two "cores" when the count divides evenly (v7x
    # megacore); otherwise a single core index (v5e/v6e: serializes for free).
    num_cores = 2 if (num_tiles >= 2 and num_tiles % 2 == 0) else 1
    tiles_per_core = num_tiles // num_cores

    # Ghost rows exist only when the tile coverage exceeds the real row count.
    needs_row_mask = (num_tiles * tile_rows != rows)

    kernel = functools.partial(
        _disc_loss_kernel,
        rows=rows,
        tile_rows=tile_rows,
        tiles_per_core=tiles_per_core,
        needs_row_mask=needs_row_mask,
    )

    in_map = lambda c, t: (c * tiles_per_core + t, 0)

    partial_sums = pl.pallas_call(
        kernel,
        out_shape=jax.ShapeDtypeStruct((num_cores * _SUBLANE, _LANE), jnp.float32),
        grid_spec=pltpu.PrefetchScalarGridSpec(
            num_scalar_prefetch=0,
            grid=(num_cores, tiles_per_core),
            in_specs=[
                pl.BlockSpec((tile_rows, _LANE), in_map),
                pl.BlockSpec((tile_rows, _LANE), in_map),
            ],
            out_specs=pl.BlockSpec((_SUBLANE, _LANE), lambda c, t: (c, 0)),
        ),
        compiler_params=pltpu.CompilerParams(
            dimension_semantics=("parallel", "arbitrary"),
            vmem_limit_bytes=32 * 1024 * 1024,
        ),
    )(r2d, f2d)

    # Each core's (8,128) block holds the raw partial sum of its tiles.
    return jnp.sum(partial_sums) / total_elems


def _reference(real, fake):
    loss1 = -jnp.log(real.astype(jnp.float32) + _EPS)
    loss2 = -jnp.log(1.0 - fake.astype(jnp.float32) + _EPS)
    return jnp.mean(loss1 + loss2)


if __name__ == "__main__":
    key = jax.random.PRNGKey(0)
    k1, k2, k3, k4, k5, k6 = jax.random.split(key, 6)

    # 1) Patch-GAN-style NCHW discriminator outputs (lane-aligned, single tile).
    shape = (2, 4, 16, 16)
    d_real = jax.random.uniform(k1, shape, jnp.float32, minval=0.05, maxval=0.95)
    d_fake = jax.random.uniform(k2, shape, jnp.float32, minval=0.05, maxval=0.95)
    loss = jax.block_until_ready(discriminator_loss(d_real, d_fake))
    ref = _reference(d_real, d_fake)
    assert jnp.allclose(loss, ref, rtol=1e-5, atol=1e-6), (loss, ref)

    # 2) Non-lane-aligned shape: exercises neutral lane padding + row mask.
    shape2 = (3, 5, 7, 11)
    d_real2 = jax.random.uniform(k3, shape2, jnp.float32, minval=0.05, maxval=0.95)
    d_fake2 = jax.random.uniform(k4, shape2, jnp.float32, minval=0.05, maxval=0.95)
    loss2 = jax.block_until_ready(discriminator_loss(d_real2, d_fake2))
    ref2 = _reference(d_real2, d_fake2)
    assert jnp.allclose(loss2, ref2, rtol=1e-5, atol=1e-6), (loss2, ref2)

    # 3) Multi-tile + 2-core split + cross-tile accumulation (small tiles forced).
    shape3 = (2, 8, 64, 64)
    d_real3 = jax.random.uniform(k5, shape3, jnp.float32, minval=0.05, maxval=0.95)
    d_fake3 = jax.random.uniform(k6, shape3, jnp.float32, minval=0.05, maxval=0.95)
    loss3 = jax.block_until_ready(
        discriminator_loss(d_real3, d_fake3, max_tile_rows=128))
    ref3 = _reference(d_real3, d_fake3)
    assert jnp.allclose(loss3, ref3, rtol=1e-5, atol=1e-6), (loss3, ref3)

    print("KERNEL_OK")
</pallas_src>

<mosaic_0001>
module attributes {stable_mosaic.version = 11 : i64} {
  func.func @_disc_loss_kernel(%arg0: i32, %arg1: i32, %arg2: memref<16x128xf32, #tpu.memory_space<vmem>>, %arg3: memref<16x128xf32, #tpu.memory_space<vmem>>, %arg4: memref<8x128xf32, #tpu.memory_space<vmem>>) attributes {dimension_semantics = [#tpu.dimension_semantics<parallel>, #tpu.dimension_semantics<arbitrary>], iteration_bounds = array<i64: 1, 1>, scalar_prefetch = 0 : i64, scratch_operands = 0 : i64, tpu.core_type = #tpu.core_type<tc>, window_params = [{transform_indices = @transform_0, window_bounds = array<i64: 16, 128>}, {transform_indices = @transform_1, window_bounds = array<i64: 16, 128>}, {transform_indices = @transform_2, window_bounds = array<i64: 8, 128>}]} {
    %c0_i32 = arith.constant 0 : i32
    %0 = arith.cmpi eq, %arg1, %c0_i32 : i32
    %1 = arith.extui %0 : i1 to i32
    %c0_i32_0 = arith.constant 0 : i32
    %2 = arith.cmpi ne, %1, %c0_i32_0 : i32
    scf.if %2 {
      %cst_12 = arith.constant 0.000000e+00 : f32
      %20 = vector.broadcast %cst_12 : f32 to vector<8x128xf32>
      %c0_13 = arith.constant 0 : index
      %c0_14 = arith.constant 0 : index
      %21 = vector.load %arg4[%c0_13, %c0_14] : memref<8x128xf32, #tpu.memory_space<vmem>>, vector<8x128xf32>
      tpu.vector_store %arg4[%c0_13, %c0_14], %20 {strides = array<i32>} : memref<8x128xf32, #tpu.memory_space<vmem>>, vector<8x128xf32>,
    } else {
    }
    %c0 = arith.constant 0 : index
    %c0_1 = arith.constant 0 : index
    %3 = vector.load %arg2[%c0, %c0_1] : memref<16x128xf32, #tpu.memory_space<vmem>>, vector<16x128xf32>
    %c0_2 = arith.constant 0 : index
    %c0_3 = arith.constant 0 : index
    %4 = vector.load %arg3[%c0_2, %c0_3] : memref<16x128xf32, #tpu.memory_space<vmem>>, vector<16x128xf32>
    %cst = arith.constant 9.99999993E-9 : f32
    %5 = vector.broadcast %cst : f32 to vector<16x128xf32>
    %6 = arith.addf %3, %5 : vector<16x128xf32>
    %cst_4 = arith.constant 1.000000e+00 : f32
    %7 = vector.broadcast %cst_4 : f32 to vector<16x128xf32>
    %8 = arith.subf %7, %4 : vector<16x128xf32>
    %cst_5 = arith.constant 9.99999993E-9 : f32
    %9 = vector.broadcast %cst_5 : f32 to vector<16x128xf32>
    %10 = arith.addf %8, %9 : vector<16x128xf32>
    %11 = arith.mulf %6, %10 : vector<16x128xf32>
    %12 = math.log %11 : vector<16x128xf32>
    %cst_6 = arith.constant 0.000000e+00 : f32
    %13 = vector.broadcast %cst_6 : f32 to vector<16x128xf32>
    %14 = arith.subf %13, %12 : vector<16x128xf32>
    %c0_7 = arith.constant 0 : index
    %c0_8 = arith.constant 0 : index
    %15 = vector.load %arg4[%c0_7, %c0_8] : memref<8x128xf32, #tpu.memory_space<vmem>>, vector<8x128xf32>
    %16 = vector.shape_cast %14 : vector<16x128xf32> to vector<2x8x128xf32>
    %cst_9 = arith.constant dense<0.000000e+00> : vector<8x128xf32>
    %17 = vector.multi_reduction <add>, %16, %cst_9 [0] : vector<2x8x128xf32> to vector<8x128xf32>
    %18 = arith.addf %15, %17 : vector<8x128xf32>
    %c0_10 = arith.constant 0 : index
    %c0_11 = arith.constant 0 : index
    %19 = vector.load %arg4[%c0_10, %c0_11] : memref<8x128xf32, #tpu.memory_space<vmem>>, vector<8x128xf32>
    tpu.vector_store %arg4[%c0_10, %c0_11], %18 {strides = array<i32>} : memref<8x128xf32, #tpu.memory_space<vmem>>, vector<8x128xf32>,
    return
  }
  func.func @transform_0(%arg0: i32, %arg1: i32) -> (i32, i32) {
    %c1_i32 = arith.constant 1 : i32
    %0 = arith.muli %arg0, %c1_i32 : i32
    %1 = arith.addi %0, %arg1 : i32
    %c0_i32 = arith.constant 0 : i32
    %c0_i32_0 = arith.constant 0 : i32
    return %1, %c0_i32 : i32, i32
  }
  func.func @transform_1(%arg0: i32, %arg1: i32) -> (i32, i32) {
    %c1_i32 = arith.constant 1 : i32
    %0 = arith.muli %arg0, %c1_i32 : i32
    %1 = arith.addi %0, %arg1 : i32
    %c0_i32 = arith.constant 0 : i32
    %c0_i32_0 = arith.constant 0 : i32
    return %1, %c0_i32 : i32, i32
  }
  func.func @transform_2(%arg0: i32, %arg1: i32) -> (i32, i32) {
    %c0_i32 = arith.constant 0 : i32
    %c0_i32_0 = arith.constant 0 : i32
    return %arg0, %c0_i32 : i32, i32
  }
}

</mosaic_0001>

<llo_original>
// kernel: tpu_custom_call.1
$region0: #{tpu_custom_call.1}
  #allocation0 [shape = 'u32[]', space=smem, size = 0x4, offset = 0x4, fixed_abs, tag = 'smem constant byte address 0x4 - core index']
  #allocation1 [shape = 'u32[144,128]{1,0:T(1,128)}', space=vmem, size = 0x12000, scoped, tag = 'internal scratch']
  %s0 = inlined_call_operand.hbm [shape: f32[16,128], index: 0, kind: input, shape index: {}]
  %s1 = inlined_call_operand.hbm [shape: f32[16,128], index: 1, kind: input, shape index: {}]
  %s2 = inlined_call_operand.hbm [shape: f32[8,128], index: 2, kind: output, shape index: {}]
  %s3 = sld [smem:[#allocation0]]
  $region30: #{tpu_custom_call.1} parent=0
    _
  %s5 = ssub.s32 1, %s3
  %s6 = scalar_select 0, %s5, %s3
  $region1: #{tpu_custom_call.1} parent=0
    #allocation2 [shape = 'u8[8192]{0}', space=vmem, size = 0x2000, scoped, tag = 'input window, operand 0, single buffered']
    #allocation3 [shape = 's32[1]{0}', space=sflag, size = 0x4, scoped, tag = 'scoped memory for tpu_custom_call.1']
    #allocation4 [shape = 's32[1]{0}', space=sflag, size = 0x4, scoped, tag = 'scoped memory for tpu_custom_call.1']
    #allocation5 [shape = 'u8[8192]{0}', space=vmem, size = 0x2000, scoped, tag = 'input window, operand 1, single buffered']
    #allocation6 [shape = 's32[1]{0}', space=sflag, size = 0x4, scoped, tag = 'scoped memory for tpu_custom_call.1']
    #allocation7 [shape = 'u8[4096]{0}', space=vmem, size = 0x1000, scoped, tag = 'output window, operand 0, single buffered']
    %7 = vsyncpa [#allocation3], 0
    %8 = vsyncpa [#allocation6], 0
    %9 = vsyncpa [#allocation4], 0
    // Predicated region
    $region2: #{tpu_custom_call.1} parent=1 // pred_check
      _
    $region3: #{tpu_custom_call.1} parent=1 // pred_check_branch
      %11 = sbr.rel (0) target = $region5
    $region4: #{tpu_custom_call.1} parent=1 // pred_region
      %s12 = sadd.s32 0, 0
      %s13 = smul.u32 2, %s12
      %s15 = ssub.s32 256, 256
      %16 = vsyncadd [#allocation3], %s15
      %s17 = smul.addr %s13, 128
      %s18 = scalar_lea.hbm %s0, %s17
      %s19 = sshll.u32 [#allocation2], 4
      %s20 = int_to_ptr.vmem [resolvable:$true] %s19
      %25 = dma.hbm_to_vmem [thread:$0]  %s18, 256, %s20, [#allocation3], 128, 128, 8
    $region5: #{tpu_custom_call.1} parent=1 // pred_fallthru
      _
    // Predicated region
    $region6: #{tpu_custom_call.1} parent=1 // pred_check
      _
    $region7: #{tpu_custom_call.1} parent=1 // pred_check_branch
      %27 = sbr.rel (0) target = $region9
    $region8: #{tpu_custom_call.1} parent=1 // pred_region
      %s28 = sadd.s32 0, 0
      %s29 = smul.u32 2, %s28
      %s31 = ssub.s32 256, 256
      %32 = vsyncadd [#allocation6], %s31
      %s33 = smul.addr %s29, 128
      %s34 = scalar_lea.hbm %s1, %s33
      %s35 = sshll.u32 [#allocation5], 4
      %s36 = int_to_ptr.vmem [resolvable:$true] %s35
      %41 = dma.hbm_to_vmem [thread:$0]  %s34, 256, %s36, [#allocation6], 128, 128, 8
    $region9: #{tpu_custom_call.1} parent=1 // pred_fallthru
      _
    // Predicated region
    $region10: #{tpu_custom_call.1} parent=1 // pred_check
      _
    $region11: #{tpu_custom_call.1} parent=1 // pred_check_branch
      %43 = sbr.rel (0) target = $region13
    $region12: #{tpu_custom_call.1} parent=1 // pred_region
      %44 = dma.done [#allocation3], 256
    $region13: #{tpu_custom_call.1} parent=1 // pred_fallthru
      _
    // Predicated region
    $region14: #{tpu_custom_call.1} parent=1 // pred_check
      _
    $region15: #{tpu_custom_call.1} parent=1 // pred_check_branch
      %46 = sbr.rel (0) target = $region17
    $region16: #{tpu_custom_call.1} parent=1 // pred_region
      %47 = dma.done [#allocation6], 256
    $region17: #{tpu_custom_call.1} parent=1 // pred_fallthru
      _
    %s48 = sadd.s32 0, 0
    %s49 = smul.u32 2, %s48
    %s50 = sadd.s32 0, 0
    %s51 = smul.u32 2, %s50
    %p52 = scmp.eq.s32.totalorder 0, 0
    // Predicated region
    $region18: #{tpu_custom_call.1} parent=1 // pred_check
      %p53 = pneg %p52
    $region19: #{tpu_custom_call.1} parent=1 // pred_check_branch
      %55 = sbr.rel (%p53) target = $region21
    $region20: #{tpu_custom_call.1} parent=1 // pred_region
      %56 = vst [vmem:[#allocation7] sm:$0xff] 0.0
    $region21: #{tpu_custom_call.1} parent=1 // pred_fallthru
      _
    %v57 = vld [vmem:[#allocation2] sm:$0xff]
    %v58 = vld [vmem:[#allocation2 + $0x8] sm:$0xff]
    %v59 = vld [vmem:[#allocation5] sm:$0xff]
    %v60 = vld [vmem:[#allocation5 + $0x8] sm:$0xff]
    %v61 = vadd.f32 %v57, 1e-08
    %v62 = vadd.f32 %v58, 1e-08
    %v63 = vsub.f32 1.0, %v59
    %v64 = vsub.f32 1.0, %v60
    %v65 = vadd.f32 %v63, 1e-08
    %v66 = vadd.f32 %v64, 1e-08
    %v67 = vmul.f32 %v61, %v65
    %v68 = vmul.f32 %v62, %v66
    %v69 = vlog2.pop %v67
    %v70 = vmul.f32 %v69, 0.6931472
    %v71 = vlog2.pop %v68
    %v72 = vmul.f32 %v71, 0.6931472
    %v73 = vsub.f32 0.0, %v70
    %v74 = vsub.f32 0.0, %v72
    %v75 = vld [vmem:[#allocation7] sm:$0xff]
    %v76 = vadd.f32 %v73, %v74
    %v77 = vadd.f32 %v75, %v76
    %78 = vst [vmem:[#allocation7] sm:$0xff] %v77
    // Predicated region
    $region22: #{tpu_custom_call.1} parent=1 // pred_check
      _
    $region23: #{tpu_custom_call.1} parent=1 // pred_check_branch
      %80 = sbr.rel (0) target = $region25
    $region24: #{tpu_custom_call.1} parent=1 // pred_region
      %s82 = ssub.s32 128, 128
      %83 = vsyncadd [#allocation4], %s82
      %s85 = sshll.u32 [#allocation7], 4
      %s86 = int_to_ptr.vmem [resolvable:$true] %s85
      %88 = dma.vmem_to_hbm [thread:$0]  %s86, 128, %s2, [#allocation4]
    $region25: #{tpu_custom_call.1} parent=1 // pred_fallthru
      _
    // Predicated region
    $region26: #{tpu_custom_call.1} parent=1 // pred_check
      _
    $region27: #{tpu_custom_call.1} parent=1 // pred_check_branch
      %90 = sbr.rel (0) target = $region29
    $region28: #{tpu_custom_call.1} parent=1 // pred_region
      %91 = dma.done [#allocation4], 128
    $region29: #{tpu_custom_call.1} parent=1 // pred_fallthru
      _
    %92 = vsyncpa [#allocation3], 1
    %93 = vsyncpa [#allocation6], 1
    %94 = vsyncpa [#allocation4], 1

</llo_original>
